<compile_context>
chip_gen: v7x
topology: tpu7x:2x2x1
jax: 0.10.0
libtpu: 0.0.40
codegen_flags: <defaults>
</compile_context>

<pallas_src>
import jax
import jax.numpy as jnp
from jax.experimental import pallas as pl
from jax.experimental.pallas import tpu as pltpu

BN_EPS = 1e-5


def _bn_cols(x, gamma, beta):
    """BatchNorm1d (training mode) on a (features, batch) block."""
    mean = jnp.mean(x, axis=1, keepdims=True)            # per-feature batch mean
    d = x - mean
    var = jnp.mean(d * d, axis=1, keepdims=True)         # biased variance
    return d * jax.lax.rsqrt(var + BN_EPS) * gamma + beta


def critic_kernel(
    state_ref,    # (S,  B)   VMEM  (state, transposed in the wrapper)
    action_ref,   # (A,  B)   VMEM
    w1_ref,       # (H1, S)   VMEM  torch lin_1.weight (out, in) layout
    aux1_ref,     # (H1, 3)   VMEM  columns: [b1, gamma1, beta1]
    w2_ref,       # (H2, H1+A) VMEM torch lin_2.weight layout
    aux2_ref,     # (H2, 3)   VMEM  columns: [b2, gamma2, beta2]
    w3_ref,       # (H2, 1)   VMEM  torch lin_3.weight, as a column
    b3_ref,       # (1,)      SMEM  lin_3 bias (true scalar)
    out_ref,      # (1,  B)   VMEM  lane-dense critic values
):
    state = state_ref[...]
    action = action_ref[...]

    # lin_1: (H1,S) @ (S,B) + b1
    h = jnp.dot(w1_ref[...], state, preferred_element_type=jnp.float32)
    h = h + aux1_ref[:, 0:1]
    # bn_2 (training-mode batch statistics) + relu_1
    h = _bn_cols(h, aux1_ref[:, 1:2], aux1_ref[:, 2:3])
    h = jnp.maximum(h, 0.0)

    # torch.cat([h, action], dim=1) becomes an axis-0 (sublane) concat in the
    # transposed layout; lin_2 is then a single MXU pass: (H2,H1+A)@(H1+A,B).
    cat = jnp.concatenate([h, action], axis=0)
    h2 = jnp.dot(w2_ref[...], cat, preferred_element_type=jnp.float32)
    h2 = h2 + aux2_ref[:, 0:1]
    # bn_3 + relu_2 (this ordering matches the reference forward())
    h2 = _bn_cols(h2, aux2_ref[:, 1:2], aux2_ref[:, 2:3])
    h2 = jnp.maximum(h2, 0.0)

    # lin_3 (single output unit): keep it off the MXU -- VPU multiply plus a
    # sublane reduction produces the (1, B) lane-dense row directly.
    q = jnp.sum(h2 * w3_ref[...], axis=0, keepdims=True) + b3_ref[0]
    out_ref[...] = q


def critic_forward(state, action, params):
    """state: (B, S), action: (B, A) -> (B, 1) critic values."""
    B = state.shape[0]
    vmem = pl.BlockSpec(memory_space=pltpu.MemorySpace.VMEM)
    smem = pl.BlockSpec(memory_space=pltpu.MemorySpace.SMEM)
    q_row = pl.pallas_call(
        critic_kernel,
        in_specs=[vmem, vmem, vmem, vmem, vmem, vmem, vmem, smem],
        out_specs=vmem,
        out_shape=jax.ShapeDtypeStruct((1, B), jnp.float32),
    )(
        state.T,            # (S, B)  -- wrapper-side layout plumbing only
        action.T,           # (A, B)
        params["w1"], params["aux1"],
        params["w2"], params["aux2"],
        params["w3"], params["b3"],
    )
    return q_row.T          # back to the PyTorch (B, 1) output shape


def init_params(key, state_size, action_size, h1, h2):
    """Deterministic synthetic init mirroring the PyTorch module's shapes.

    lin_1 / lin_2 weights ~ U(-1/sqrt(fan), 1/sqrt(fan)) (fan = weight.size()[0]
    as in the reference init_hidden_layers), lin_3 ~ U(-3e-3, 3e-3); biases use
    PyTorch's default Linear bias init; BN gamma=1, beta=0.
    Weights are kept in torch's (out_features, in_features) layout.
    """
    ks = jax.random.split(key, 6)

    def u(k, shape, lim):
        return jax.random.uniform(k, shape, jnp.float32, -lim, lim)

    lim1 = 1.0 / jnp.sqrt(jnp.float32(h1))
    lim2 = 1.0 / jnp.sqrt(jnp.float32(h2))
    w1 = u(ks[0], (h1, state_size), lim1)
    b1 = u(ks[1], (h1,), 1.0 / jnp.sqrt(jnp.float32(state_size)))
    w2 = u(ks[2], (h2, h1 + action_size), lim2)
    b2 = u(ks[3], (h2,), 1.0 / jnp.sqrt(jnp.float32(h1 + action_size)))
    w3 = u(ks[4], (h2, 1), 0.003)
    b3 = u(ks[5], (1,), 1.0 / jnp.sqrt(jnp.float32(h2)))

    aux1 = jnp.stack([b1, jnp.ones((h1,), jnp.float32), jnp.zeros((h1,), jnp.float32)], axis=1)
    aux2 = jnp.stack([b2, jnp.ones((h2,), jnp.float32), jnp.zeros((h2,), jnp.float32)], axis=1)

    return {"w1": w1, "aux1": aux1, "w2": w2, "aux2": aux2, "w3": w3, "b3": b3}


def critic_reference(state, action, p):
    """Pure-JAX reference (standard batch-major orientation) for sanity checking."""
    b1, g1, be1 = p["aux1"][:, 0], p["aux1"][:, 1], p["aux1"][:, 2]
    b2, g2, be2 = p["aux2"][:, 0], p["aux2"][:, 1], p["aux2"][:, 2]

    def bn(x, g, b):
        mean = jnp.mean(x, axis=0, keepdims=True)
        var = jnp.mean((x - mean) ** 2, axis=0, keepdims=True)
        return (x - mean) / jnp.sqrt(var + BN_EPS) * g + b

    h = state @ p["w1"].T + b1
    h = jnp.maximum(bn(h, g1, be1), 0.0)
    cat = jnp.concatenate([h, action], axis=1)
    h2 = cat @ p["w2"].T + b2
    h2 = jnp.maximum(bn(h2, g2, be2), 0.0)
    return h2 @ p["w3"] + p["b3"]


if __name__ == "__main__":
    # Small shapes: batch=8, state_size=16, action_size=8, hidden sizes 32/32
    # (settings.critic_size_1 = settings.critic_size_2 = 32 for this run).
    B, S, A, H1, H2 = 8, 16, 8, 32, 32

    key = jax.random.PRNGKey(0)
    k_state, k_action, k_params = jax.random.split(key, 3)

    state = jax.random.normal(k_state, (B, S), jnp.float32)
    action = jax.random.normal(k_action, (B, A), jnp.float32)
    params = init_params(k_params, S, A, H1, H2)

    out = critic_forward(state, action, params)
    out = jax.block_until_ready(out)

    ref = critic_reference(state, action, params)
    assert out.shape == (B, 1), out.shape
    assert jnp.allclose(out, ref, atol=1e-3, rtol=1e-3), (out, ref)

    print("KERNEL_OK")
</pallas_src>

<mosaic_0001>
module attributes {stable_mosaic.version = 11 : i64} {
  func.func @critic_kernel(%arg0: memref<16x8xf32, #tpu.memory_space<vmem>>, %arg1: memref<8x8xf32, #tpu.memory_space<vmem>>, %arg2: memref<32x16xf32, #tpu.memory_space<vmem>>, %arg3: memref<32x3xf32, #tpu.memory_space<vmem>>, %arg4: memref<32x40xf32, #tpu.memory_space<vmem>>, %arg5: memref<32x3xf32, #tpu.memory_space<vmem>>, %arg6: memref<32x1xf32, #tpu.memory_space<vmem>>, %arg7: memref<1xf32, #tpu.memory_space<smem>>, %arg8: memref<1x8xf32, #tpu.memory_space<vmem>>) attributes {dimension_semantics = [], scalar_prefetch = 0 : i64, scratch_operands = 0 : i64, tpu.core_type = #tpu.core_type<tc>} {
    %c0 = arith.constant 0 : index
    %c0_0 = arith.constant 0 : index
    %0 = vector.load %arg0[%c0, %c0_0] : memref<16x8xf32, #tpu.memory_space<vmem>>, vector<16x8xf32>
    %c0_1 = arith.constant 0 : index
    %c0_2 = arith.constant 0 : index
    %1 = vector.load %arg1[%c0_1, %c0_2] : memref<8x8xf32, #tpu.memory_space<vmem>>, vector<8x8xf32>
    %c0_3 = arith.constant 0 : index
    %c0_4 = arith.constant 0 : index
    %2 = vector.load %arg2[%c0_3, %c0_4] : memref<32x16xf32, #tpu.memory_space<vmem>>, vector<32x16xf32>
    %cst = arith.constant dense<0.000000e+00> : vector<32x8xf32>
    %3 = tpu.matmul %2, %0, %cst {dimension_numbers = #tpu.dot_dimension_numbers<[1], [0], [0], [1], [0, 0, 1, 1], [], []>} : vector<32x16xf32>, vector<16x8xf32>, vector<32x8xf32> -> vector<32x8xf32>
    %c0_5 = arith.constant 0 : index
    %c0_6 = arith.constant 0 : index
    %4 = vector.load %arg3[%c0_5, %c0_6] : memref<32x3xf32, #tpu.memory_space<vmem>>, vector<32x1xf32>
    %5 = vector.broadcast %4 : vector<32x1xf32> to vector<32x8xf32>
    %6 = arith.addf %3, %5 : vector<32x8xf32>
    %c0_7 = arith.constant 0 : index
    %c1 = arith.constant 1 : index
    %7 = vector.load %arg3[%c0_7, %c1] : memref<32x3xf32, #tpu.memory_space<vmem>>, vector<32x1xf32>
    %c0_8 = arith.constant 0 : index
    %c2 = arith.constant 2 : index
    %8 = vector.load %arg3[%c0_8, %c2] : memref<32x3xf32, #tpu.memory_space<vmem>>, vector<32x1xf32>
    %cst_9 = arith.constant dense<0.000000e+00> : vector<32xf32>
    %9 = vector.multi_reduction <add>, %6, %cst_9 [1] : vector<32x8xf32> to vector<32xf32>
    %10 = vector.shape_cast %9 : vector<32xf32> to vector<32x1xf32>
    %cst_10 = arith.constant 8.000000e+00 : f32
    %11 = vector.broadcast %cst_10 : f32 to vector<32x1xf32>
    %12 = arith.divf %10, %11 : vector<32x1xf32>
    %13 = vector.broadcast %12 : vector<32x1xf32> to vector<32x8xf32>
    %14 = arith.subf %6, %13 : vector<32x8xf32>
    %15 = arith.mulf %14, %14 : vector<32x8xf32>
    %cst_11 = arith.constant dense<0.000000e+00> : vector<32xf32>
    %16 = vector.multi_reduction <add>, %15, %cst_11 [1] : vector<32x8xf32> to vector<32xf32>
    %17 = vector.shape_cast %16 : vector<32xf32> to vector<32x1xf32>
    %cst_12 = arith.constant 8.000000e+00 : f32
    %18 = vector.broadcast %cst_12 : f32 to vector<32x1xf32>
    %19 = arith.divf %17, %18 : vector<32x1xf32>
    %cst_13 = arith.constant 9.99999974E-6 : f32
    %20 = vector.broadcast %cst_13 : f32 to vector<32x1xf32>
    %21 = arith.addf %19, %20 : vector<32x1xf32>
    %22 = math.rsqrt %21 : vector<32x1xf32>
    %23 = vector.broadcast %22 : vector<32x1xf32> to vector<32x8xf32>
    %24 = arith.mulf %14, %23 : vector<32x8xf32>
    %25 = vector.broadcast %7 : vector<32x1xf32> to vector<32x8xf32>
    %26 = arith.mulf %24, %25 : vector<32x8xf32>
    %27 = vector.broadcast %8 : vector<32x1xf32> to vector<32x8xf32>
    %28 = arith.addf %26, %27 : vector<32x8xf32>
    %cst_14 = arith.constant 0.000000e+00 : f32
    %29 = vector.broadcast %cst_14 : f32 to vector<32x8xf32>
    %30 = arith.maximumf %28, %29 : vector<32x8xf32>
    %31 = tpu.concatenate %30, %1 in 0 : vector<32x8xf32>, vector<8x8xf32> -> vector<40x8xf32>
    %c0_15 = arith.constant 0 : index
    %c0_16 = arith.constant 0 : index
    %32 = vector.load %arg4[%c0_15, %c0_16] : memref<32x40xf32, #tpu.memory_space<vmem>>, vector<32x40xf32>
    %cst_17 = arith.constant dense<0.000000e+00> : vector<32x8xf32>
    %33 = tpu.matmul %32, %31, %cst_17 {dimension_numbers = #tpu.dot_dimension_numbers<[1], [0], [0], [1], [0, 0, 1, 1], [], []>} : vector<32x40xf32>, vector<40x8xf32>, vector<32x8xf32> -> vector<32x8xf32>
    %c0_18 = arith.constant 0 : index
    %c0_19 = arith.constant 0 : index
    %34 = vector.load %arg5[%c0_18, %c0_19] : memref<32x3xf32, #tpu.memory_space<vmem>>, vector<32x1xf32>
    %35 = vector.broadcast %34 : vector<32x1xf32> to vector<32x8xf32>
    %36 = arith.addf %33, %35 : vector<32x8xf32>
    %c0_20 = arith.constant 0 : index
    %c1_21 = arith.constant 1 : index
    %37 = vector.load %arg5[%c0_20, %c1_21] : memref<32x3xf32, #tpu.memory_space<vmem>>, vector<32x1xf32>
    %c0_22 = arith.constant 0 : index
    %c2_23 = arith.constant 2 : index
    %38 = vector.load %arg5[%c0_22, %c2_23] : memref<32x3xf32, #tpu.memory_space<vmem>>, vector<32x1xf32>
    %cst_24 = arith.constant dense<0.000000e+00> : vector<32xf32>
    %39 = vector.multi_reduction <add>, %36, %cst_24 [1] : vector<32x8xf32> to vector<32xf32>
    %40 = vector.shape_cast %39 : vector<32xf32> to vector<32x1xf32>
    %cst_25 = arith.constant 8.000000e+00 : f32
    %41 = vector.broadcast %cst_25 : f32 to vector<32x1xf32>
    %42 = arith.divf %40, %41 : vector<32x1xf32>
    %43 = vector.broadcast %42 : vector<32x1xf32> to vector<32x8xf32>
    %44 = arith.subf %36, %43 : vector<32x8xf32>
    %45 = arith.mulf %44, %44 : vector<32x8xf32>
    %cst_26 = arith.constant dense<0.000000e+00> : vector<32xf32>
    %46 = vector.multi_reduction <add>, %45, %cst_26 [1] : vector<32x8xf32> to vector<32xf32>
    %47 = vector.shape_cast %46 : vector<32xf32> to vector<32x1xf32>
    %cst_27 = arith.constant 8.000000e+00 : f32
    %48 = vector.broadcast %cst_27 : f32 to vector<32x1xf32>
    %49 = arith.divf %47, %48 : vector<32x1xf32>
    %cst_28 = arith.constant 9.99999974E-6 : f32
    %50 = vector.broadcast %cst_28 : f32 to vector<32x1xf32>
    %51 = arith.addf %49, %50 : vector<32x1xf32>
    %52 = math.rsqrt %51 : vector<32x1xf32>
    %53 = vector.broadcast %52 : vector<32x1xf32> to vector<32x8xf32>
    %54 = arith.mulf %44, %53 : vector<32x8xf32>
    %55 = vector.broadcast %37 : vector<32x1xf32> to vector<32x8xf32>
    %56 = arith.mulf %54, %55 : vector<32x8xf32>
    %57 = vector.broadcast %38 : vector<32x1xf32> to vector<32x8xf32>
    %58 = arith.addf %56, %57 : vector<32x8xf32>
    %cst_29 = arith.constant 0.000000e+00 : f32
    %59 = vector.broadcast %cst_29 : f32 to vector<32x8xf32>
    %60 = arith.maximumf %58, %59 : vector<32x8xf32>
    %c0_30 = arith.constant 0 : index
    %c0_31 = arith.constant 0 : index
    %61 = vector.load %arg6[%c0_30, %c0_31] : memref<32x1xf32, #tpu.memory_space<vmem>>, vector<32x1xf32>
    %62 = vector.broadcast %61 : vector<32x1xf32> to vector<32x8xf32>
    %63 = arith.mulf %60, %62 : vector<32x8xf32>
    %cst_32 = arith.constant dense<0.000000e+00> : vector<8xf32>
    %64 = vector.multi_reduction <add>, %63, %cst_32 [0] : vector<32x8xf32> to vector<8xf32>
    %65 = vector.shape_cast %64 : vector<8xf32> to vector<1x8xf32>
    %c0_33 = arith.constant 0 : index
    %66 = memref.load %arg7[%c0_33] : memref<1xf32, #tpu.memory_space<smem>>
    %67 = vector.broadcast %66 : f32 to vector<1x8xf32>
    %68 = arith.addf %65, %67 : vector<1x8xf32>
    %c0_34 = arith.constant 0 : index
    %c0_35 = arith.constant 0 : index
    %69 = vector.load %arg8[%c0_34, %c0_35] : memref<1x8xf32, #tpu.memory_space<vmem>>, vector<1x8xf32>
    tpu.vector_store %arg8[%c0_34, %c0_35], %68 {strides = array<i32>} : memref<1x8xf32, #tpu.memory_space<vmem>>, vector<1x8xf32>,
    return
  }
}

</mosaic_0001>

<llo_original>
// kernel: tpu_custom_call.1
$region0: #{tpu_custom_call.1}
  #allocation0 [shape = 'u32[]', space=smem, size = 0x4, offset = 0x4, fixed_abs, tag = 'smem constant byte address 0x4 - core index']
  #allocation1 [shape = 'u32[144,128]{1,0:T(1,128)}', space=vmem, size = 0x12000, scoped, tag = 'internal scratch']
  #allocation2 [shape = 'f32[1]{0:T(128)S(6)}', space=smem, size = 0x200, scoped, tag = 'scoped memory for tpu_custom_call.1']
  %s0 = inlined_call_operand.vmem [shape: f32[16,8], index: 0, kind: input, shape index: {}]
  %s1 = inlined_call_operand.vmem [shape: f32[8,8], index: 1, kind: input, shape index: {}]
  %s2 = inlined_call_operand.vmem [shape: f32[32,16], index: 2, kind: input, shape index: {}]
  %s3 = inlined_call_operand.vmem [shape: f32[32,3], index: 3, kind: input, shape index: {}]
  %s4 = inlined_call_operand.vmem [shape: f32[32,40], index: 4, kind: input, shape index: {}]
  %s5 = inlined_call_operand.vmem [shape: f32[32,3], index: 5, kind: input, shape index: {}]
  %s6 = inlined_call_operand.vmem [shape: f32[32,1], index: 6, kind: input, shape index: {}]
  %s7 = inlined_call_operand.<no memory space> [shape: f32[1], index: 7, kind: input, shape index: {}]
  %s8 = inlined_call_operand.hbm [shape: f32[1,8], index: 8, kind: output, shape index: {}]
  %s9 = sld [smem:[#allocation0]]
  $region42: #{tpu_custom_call.1} parent=0
    _
  %s11 = ssub.s32 1, %s9
  %s12 = scalar_select 0, %s11, %s9
  %13 = sst [smem:[#allocation2]] %s7
  $region1: #{tpu_custom_call.1} parent=0
    #allocation3 [shape = 'u8[512]{0}', space=vmem, size = 0x400, scoped, tag = 'output window, operand 0, single buffered']
    #allocation4 [shape = 's32[1]{0}', space=sflag, size = 0x4, scoped, tag = 'scoped memory for tpu_custom_call.1']
    %14 = vsyncpa [#allocation4], 0
    // Predicated region
    $region2: #{tpu_custom_call.1} parent=1 // pred_check
      _
    $region3: #{tpu_custom_call.1} parent=1 // pred_check_branch
      %16 = sbr.rel (0) target = $region5
    $region4: #{tpu_custom_call.1} parent=1 // pred_region
      _
    $region5: #{tpu_custom_call.1} parent=1 // pred_fallthru
      _
    // Predicated region
    $region6: #{tpu_custom_call.1} parent=1 // pred_check
      _
    $region7: #{tpu_custom_call.1} parent=1 // pred_check_branch
      %18 = sbr.rel (0) target = $region9
    $region8: #{tpu_custom_call.1} parent=1 // pred_region
      _
    $region9: #{tpu_custom_call.1} parent=1 // pred_fallthru
      _
    // Predicated region
    $region10: #{tpu_custom_call.1} parent=1 // pred_check
      _
    $region11: #{tpu_custom_call.1} parent=1 // pred_check_branch
      %20 = sbr.rel (0) target = $region13
    $region12: #{tpu_custom_call.1} parent=1 // pred_region
      _
    $region13: #{tpu_custom_call.1} parent=1 // pred_fallthru
      _
    // Predicated region
    $region14: #{tpu_custom_call.1} parent=1 // pred_check
      _
    $region15: #{tpu_custom_call.1} parent=1 // pred_check_branch
      %22 = sbr.rel (0) target = $region17
    $region16: #{tpu_custom_call.1} parent=1 // pred_region
      _
    $region17: #{tpu_custom_call.1} parent=1 // pred_fallthru
      _
    // Predicated region
    $region18: #{tpu_custom_call.1} parent=1 // pred_check
      _
    $region19: #{tpu_custom_call.1} parent=1 // pred_check_branch
      %24 = sbr.rel (0) target = $region21
    $region20: #{tpu_custom_call.1} parent=1 // pred_region
      _
    $region21: #{tpu_custom_call.1} parent=1 // pred_fallthru
      _
    // Predicated region
    $region22: #{tpu_custom_call.1} parent=1 // pred_check
      _
    $region23: #{tpu_custom_call.1} parent=1 // pred_check_branch
      %26 = sbr.rel (0) target = $region25
    $region24: #{tpu_custom_call.1} parent=1 // pred_region
      _
    $region25: #{tpu_custom_call.1} parent=1 // pred_fallthru
      _
    // Predicated region
    $region26: #{tpu_custom_call.1} parent=1 // pred_check
      _
    $region27: #{tpu_custom_call.1} parent=1 // pred_check_branch
      %28 = sbr.rel (0) target = $region29
    $region28: #{tpu_custom_call.1} parent=1 // pred_region
      _
    $region29: #{tpu_custom_call.1} parent=1 // pred_fallthru
      _
    // Predicated region
    $region30: #{tpu_custom_call.1} parent=1 // pred_check
      _
    $region31: #{tpu_custom_call.1} parent=1 // pred_check_branch
      %30 = sbr.rel (0) target = $region33
    $region32: #{tpu_custom_call.1} parent=1 // pred_region
      _
    $region33: #{tpu_custom_call.1} parent=1 // pred_fallthru
      _
    %v31 = vld [vmem:[%s0] sm:$0xff]
    %v32 = vld [vmem:[%s0 + $0x8] sm:$0xff]
    %v33 = vld [vmem:[%s1] sm:$0xff]
    %v34 = vld [vmem:[%s2] sm:$0xff]
    %v35 = vld [vmem:[%s2 + $0x8] sm:$0xff]
    %v36 = vld [vmem:[%s2 + $0x10] sm:$0xff]
    %v37 = vld [vmem:[%s2 + $0x18] sm:$0xff]
    %v38 = vld [vmem:[%s3] sm:$0xff]
    %v39 = vld [vmem:[%s3 + $0x8] sm:$0xff]
    %v40 = vld [vmem:[%s3 + $0x10] sm:$0xff]
    %v41 = vld [vmem:[%s3 + $0x18] sm:$0xff]
    %43 = vset.pattern.permute.xlu0 0
    %44 = vperm.xlu0 %43, %v38
    %v45 = vpop.permute.xlu0 %44
    %48 = vset.pattern.permute.xlu0 0
    %49 = vperm.xlu0 %48, %v39
    %v50 = vpop.permute.xlu0 %49
    %53 = vset.pattern.permute.xlu0 0
    %54 = vperm.xlu0 %53, %v40
    %v55 = vpop.permute.xlu0 %54
    %58 = vset.pattern.permute.xlu0 0
    %59 = vperm.xlu0 %58, %v41
    %v60 = vpop.permute.xlu0 %59
    %vm62 = vcmask 130048
    %v64 = vsel %vm62, %v34, 0
    %v67 = vsel %vm62, %v35, 0
    %v70 = vsel %vm62, %v36, 0
    %v73 = vsel %vm62, %v37, 0
    %75 = vmatprep.subr.mxu0 0.0
    %76 = vmatpush1.msra.mxu0 %v31
    %77 = vmatprep.subr.mxu0 0.0
    %78 = vmatpush1.msra.mxu0 %v32
    %79 = vmatprep.subr.mxu0 0.0
    %80 = vmatpush1.msra.mxu0 0.0
    %81 = vmatprep.subr.mxu0 0.0
    %82 = vmatpush1.msra.mxu0 0.0
    %83 = vmatprep.subr.mxu0 0.0
    %84 = vmatpush1.msra.mxu0 0.0
    %85 = vmatprep.subr.mxu0 0.0
    %86 = vmatpush1.msra.mxu0 0.0
    %87 = vmatprep.subr.mxu0 0.0
    %88 = vmatpush1.msra.mxu0 0.0
    %89 = vmatprep.subr.mxu0 0.0
    %90 = vmatpush1.msra.mxu0 0.0
    %91 = vmatprep.subr.mxu0 0.0
    %92 = vmatpush1.msra.mxu0 0.0
    %93 = vmatprep.subr.mxu0 0.0
    %94 = vmatpush1.msra.mxu0 0.0
    %95 = vmatprep.subr.mxu0 0.0
    %96 = vmatpush1.msra.mxu0 0.0
    %97 = vmatprep.subr.mxu0 0.0
    %98 = vmatpush1.msra.mxu0 0.0
    %99 = vmatprep.subr.mxu0 0.0
    %100 = vmatpush1.msra.mxu0 0.0
    %101 = vmatprep.subr.mxu0 0.0
    %102 = vmatpush1.msra.mxu0 0.0
    %103 = vmatprep.subr.mxu0 0.0
    %104 = vmatpush1.msra.mxu0 0.0
    %105 = vmatprep.subr.mxu0 0.0
    %106 = vmatpush1.msra.mxu0 0.0
    %107 = vmatprep.subr.mxu0 0.0
    %108 = vmatpush1.msra.mxu0 0.0
    %109 = vmatprep.subr.mxu0 0.0
    %110 = vmatpush1.msra.mxu0 0.0
    %111 = vmatprep.subr.mxu0 0.0
    %112 = vmatpush1.msra.mxu0 0.0
    %113 = vmatprep.subr.mxu0 0.0
    %114 = vmatpush1.msra.mxu0 0.0
    %115 = vmatprep.subr.mxu0 0.0
    %116 = vmatpush1.msra.mxu0 0.0
    %117 = vmatprep.subr.mxu0 0.0
    %118 = vmatpush1.msra.mxu0 0.0
    %119 = vmatprep.subr.mxu0 0.0
    %120 = vmatpush1.msra.mxu0 0.0
    %121 = vmatprep.subr.mxu0 0.0
    %122 = vmatpush1.msra.mxu0 0.0
    %123 = vmatprep.subr.mxu0 0.0
    %124 = vmatpush1.msra.mxu0 0.0
    %125 = vmatprep.subr.mxu0 0.0
    %126 = vmatpush1.msra.mxu0 0.0
    %127 = vmatprep.subr.mxu0 0.0
    %128 = vmatpush1.msra.mxu0 0.0
    %129 = vmatprep.subr.mxu0 0.0
    %130 = vmatpush1.msra.mxu0 0.0
    %131 = vmatprep.subr.mxu0 0.0
    %132 = vmatpush1.msra.mxu0 0.0
    %133 = vmatprep.subr.mxu0 0.0
    %134 = vmatpush1.msra.mxu0 0.0
    %135 = vmatprep.subr.mxu0 0.0
    %136 = vmatpush1.msra.mxu0 0.0
    %137 = vmatprep.subr.mxu0 0.0
    %138 = vmatpush1.msra.mxu0 0.0
    %139 = vmatprep.mubr.f32.mxu0 0.0
    %140 = vmatmul.mubr.f32.gmra.mrb[0].mxu0 %v64
    %v141 = vpop.f32.mrb[0].mxu0
    %v142 = vadd.f32 %v45, %v141
    %v143 = vpop.f32.mrb[0].mxu0
    %144 = vmatprep.mubr.f32.mxu0 0.0
    %145 = vmatmul.mubr.f32.gmra.mrb[0].mxu0 %v67
    %v146 = vpop.f32.mrb[0].mxu0
    %v147 = vadd.f32 %v50, %v146
    %v148 = vpop.f32.mrb[0].mxu0
    %149 = vmatprep.mubr.f32.mxu0 0.0
    %150 = vmatmul.mubr.f32.gmra.mrb[0].mxu0 %v70
    %v151 = vpop.f32.mrb[0].mxu0
    %v152 = vadd.f32 %v55, %v151
    %v153 = vpop.f32.mrb[0].mxu0
    %154 = vmatprep.mubr.f32.mxu0 0.0
    %155 = vmatmul.mubr.f32.gmra.mrb[0].mxu0 %v73
    %v156 = vpop.f32.mrb[0].mxu0
    %v157 = vadd.f32 %v60, %v156
    %v158 = vpop.f32.mrb[0].mxu0
    %159 = vdwg.mxu0
    %vm160 = vcmask 64512
    %v161 = vsel %vm160, %v142, 0.0
    %162 = vadd.xlane.f32.xlu0 %v161
    %v163 = vpop.xlane.xlu0 %162
    %v164 = vsel %vm160, %v147, 0.0
    %165 = vadd.xlane.f32.xlu0 %v164
    %v166 = vpop.xlane.xlu0 %165
    %v167 = vsel %vm160, %v152, 0.0
    %168 = vadd.xlane.f32.xlu0 %v167
    %v169 = vpop.xlane.xlu0 %168
    %v170 = vsel %vm160, %v157, 0.0
    %171 = vadd.xlane.f32.xlu0 %v170
    %v172 = vpop.xlane.xlu0 %171
    %v173 = vrcp.pop 8.0
    %v174 = vmul.f32 %v163, %v173
    %v175 = vmul.f32 %v166, %v173
    %v176 = vmul.f32 %v169, %v173
    %v177 = vmul.f32 %v172, %v173
    %v178 = vsub.f32 %v142, %v174
    %v179 = vsub.f32 %v147, %v175
    %v180 = vsub.f32 %v152, %v176
    %v181 = vsub.f32 %v157, %v177
    %v182 = vmul.f32 %v178, %v178
    %v183 = vmul.f32 %v179, %v179
    %v184 = vmul.f32 %v180, %v180
    %v185 = vmul.f32 %v181, %v181
    %v186 = vsel %vm160, %v182, 0.0
    %187 = vadd.xlane.f32.xlu0 %v186
    %v188 = vpop.xlane.xlu0 %187
    %v189 = vsel %vm160, %v183, 0.0
    %190 = vadd.xlane.f32.xlu0 %v189
    %v191 = vpop.xlane.xlu0 %190
    %v192 = vsel %vm160, %v184, 0.0
    %193 = vadd.xlane.f32.xlu0 %v192
    %v194 = vpop.xlane.xlu0 %193
    %v195 = vsel %vm160, %v185, 0.0
    %196 = vadd.xlane.f32.xlu0 %v195
    %v197 = vpop.xlane.xlu0 %196
    %v198 = vmul.f32 %v188, %v173
    %v199 = vmul.f32 %v191, %v173
    %v200 = vmul.f32 %v194, %v173
    %v201 = vmul.f32 %v197, %v173
    %v202 = vadd.f32 %v198, 1e-05
    %v203 = vadd.f32 %v199, 1e-05
    %v204 = vadd.f32 %v200, 1e-05
    %v205 = vadd.f32 %v201, 1e-05
    %v206 = vrsqrt.pop %v202
    %v207 = vrsqrt.pop %v203
    %v208 = vrsqrt.pop %v204
    %v209 = vrsqrt.pop %v205
    %v210 = vmul.f32 %v178, %v206
    %v211 = vmul.f32 %v179, %v207
    %v212 = vmul.f32 %v180, %v208
    %v213 = vmul.f32 %v181, %v209
    %214 = vset.pattern.permute.xlu0 1
    %215 = vperm.xlu0 %214, %v38
    %v216 = vpop.permute.xlu0 %215
    %218 = vset.pattern.permute.xlu0 1
    %219 = vperm.xlu0 %218, %v39
    %v220 = vpop.permute.xlu0 %219
    %222 = vset.pattern.permute.xlu0 1
    %223 = vperm.xlu0 %222, %v40
    %v224 = vpop.permute.xlu0 %223
    %226 = vset.pattern.permute.xlu0 1
    %227 = vperm.xlu0 %226, %v41
    %v228 = vpop.permute.xlu0 %227
    %v230 = vmul.f32 %v210, %v216
    %v231 = vmul.f32 %v211, %v220
    %v232 = vmul.f32 %v212, %v224
    %v233 = vmul.f32 %v213, %v228
    %234 = vset.pattern.permute.xlu0 2
    %235 = vperm.xlu0 %234, %v38
    %v236 = vpop.permute.xlu0 %235
    %238 = vset.pattern.permute.xlu0 2
    %239 = vperm.xlu0 %238, %v39
    %v240 = vpop.permute.xlu0 %239
    %242 = vset.pattern.permute.xlu0 2
    %243 = vperm.xlu0 %242, %v40
    %v244 = vpop.permute.xlu0 %243
    %246 = vset.pattern.permute.xlu0 2
    %247 = vperm.xlu0 %246, %v41
    %v248 = vpop.permute.xlu0 %247
    %v250 = vadd.f32 %v230, %v236
    %v251 = vadd.f32 %v231, %v240
    %v252 = vadd.f32 %v232, %v244
    %v253 = vadd.f32 %v233, %v248
    %v254 = vmax.f32 %v250, 0.0
    %v255 = vmax.f32 %v251, 0.0
    %v256 = vmax.f32 %v252, 0.0
    %v257 = vmax.f32 %v253, 0.0
    %v258 = vld [vmem:[%s4] sm:$0xff]
    %v259 = vld [vmem:[%s4 + $0x8] sm:$0xff]
    %v260 = vld [vmem:[%s4 + $0x10] sm:$0xff]
    %v261 = vld [vmem:[%s4 + $0x18] sm:$0xff]
    %v262 = vld [vmem:[%s5] sm:$0xff]
    %v263 = vld [vmem:[%s5 + $0x8] sm:$0xff]
    %v264 = vld [vmem:[%s5 + $0x10] sm:$0xff]
    %v265 = vld [vmem:[%s5 + $0x18] sm:$0xff]
    %267 = vset.pattern.permute.xlu0 0
    %268 = vperm.xlu0 %267, %v262
    %v269 = vpop.permute.xlu0 %268
    %272 = vset.pattern.permute.xlu0 0
    %273 = vperm.xlu0 %272, %v263
    %v274 = vpop.permute.xlu0 %273
    %277 = vset.pattern.permute.xlu0 0
    %278 = vperm.xlu0 %277, %v264
    %v279 = vpop.permute.xlu0 %278
    %282 = vset.pattern.permute.xlu0 0
    %283 = vperm.xlu0 %282, %v265
    %v284 = vpop.permute.xlu0 %283
    %vm286 = vcmask 326656
    %v288 = vsel %vm286, %v258, 0
    %v291 = vsel %vm286, %v259, 0
    %v294 = vsel %vm286, %v260, 0
    %v297 = vsel %vm286, %v261, 0
    %299 = vmatprep.subr.mxu0 0.0
    %300 = vmatpush1.msra.mxu0 %v254
    %301 = vmatprep.subr.mxu0 0.0
    %302 = vmatpush1.msra.mxu0 %v255
    %303 = vmatprep.subr.mxu0 0.0
    %304 = vmatpush1.msra.mxu0 %v256
    %305 = vmatprep.subr.mxu0 0.0
    %306 = vmatpush1.msra.mxu0 %v257
    %307 = vmatprep.subr.mxu0 0.0
    %308 = vmatpush1.msra.mxu0 %v33
    %309 = vmatprep.subr.mxu0 0.0
    %310 = vmatpush1.msra.mxu0 0.0
    %311 = vmatprep.subr.mxu0 0.0
    %312 = vmatpush1.msra.mxu0 0.0
    %313 = vmatprep.subr.mxu0 0.0
    %314 = vmatpush1.msra.mxu0 0.0
    %315 = vmatprep.subr.mxu0 0.0
    %316 = vmatpush1.msra.mxu0 0.0
    %317 = vmatprep.subr.mxu0 0.0
    %318 = vmatpush1.msra.mxu0 0.0
    %319 = vmatprep.subr.mxu0 0.0
    %320 = vmatpush1.msra.mxu0 0.0
    %321 = vmatprep.subr.mxu0 0.0
    %322 = vmatpush1.msra.mxu0 0.0
    %323 = vmatprep.subr.mxu0 0.0
    %324 = vmatpush1.msra.mxu0 0.0
    %325 = vmatprep.subr.mxu0 0.0
    %326 = vmatpush1.msra.mxu0 0.0
    %327 = vmatprep.subr.mxu0 0.0
    %328 = vmatpush1.msra.mxu0 0.0
    %329 = vmatprep.subr.mxu0 0.0
    %330 = vmatpush1.msra.mxu0 0.0
    %331 = vmatprep.subr.mxu0 0.0
    %332 = vmatpush1.msra.mxu0 0.0
    %333 = vmatprep.subr.mxu0 0.0
    %334 = vmatpush1.msra.mxu0 0.0
    %335 = vmatprep.subr.mxu0 0.0
    %336 = vmatpush1.msra.mxu0 0.0
    %337 = vmatprep.subr.mxu0 0.0
    %338 = vmatpush1.msra.mxu0 0.0
    %339 = vmatprep.subr.mxu0 0.0
    %340 = vmatpush1.msra.mxu0 0.0
    %341 = vmatprep.subr.mxu0 0.0
    %342 = vmatpush1.msra.mxu0 0.0
    %343 = vmatprep.subr.mxu0 0.0
    %344 = vmatpush1.msra.mxu0 0.0
    %345 = vmatprep.subr.mxu0 0.0
    %346 = vmatpush1.msra.mxu0 0.0
    %347 = vmatprep.subr.mxu0 0.0
    %348 = vmatpush1.msra.mxu0 0.0
    %349 = vmatprep.subr.mxu0 0.0
    %350 = vmatpush1.msra.mxu0 0.0
    %351 = vmatprep.subr.mxu0 0.0
    %352 = vmatpush1.msra.mxu0 0.0
    %353 = vmatprep.subr.mxu0 0.0
    %354 = vmatpush1.msra.mxu0 0.0
    %355 = vmatprep.subr.mxu0 0.0
    %356 = vmatpush1.msra.mxu0 0.0
    %357 = vmatprep.subr.mxu0 0.0
    %358 = vmatpush1.msra.mxu0 0.0
    %359 = vmatprep.subr.mxu0 0.0
    %360 = vmatpush1.msra.mxu0 0.0
    %361 = vmatprep.subr.mxu0 0.0
    %362 = vmatpush1.msra.mxu0 0.0
    %363 = vmatprep.mubr.f32.mxu0 0.0
    %364 = vmatmul.mubr.f32.gmra.mrb[0].mxu0 %v288
    %v365 = vpop.f32.mrb[0].mxu0
    %v366 = vadd.f32 %v269, %v365
    %v367 = vpop.f32.mrb[0].mxu0
    %368 = vmatprep.mubr.f32.mxu0 0.0
    %369 = vmatmul.mubr.f32.gmra.mrb[0].mxu0 %v291
    %v370 = vpop.f32.mrb[0].mxu0
    %v371 = vadd.f32 %v274, %v370
    %v372 = vpop.f32.mrb[0].mxu0
    %373 = vmatprep.mubr.f32.mxu0 0.0
    %374 = vmatmul.mubr.f32.gmra.mrb[0].mxu0 %v294
    %v375 = vpop.f32.mrb[0].mxu0
    %v376 = vadd.f32 %v279, %v375
    %v377 = vpop.f32.mrb[0].mxu0
    %378 = vmatprep.mubr.f32.mxu0 0.0
    %379 = vmatmul.mubr.f32.gmra.mrb[0].mxu0 %v297
    %v380 = vpop.f32.mrb[0].mxu0
    %v381 = vadd.f32 %v284, %v380
    %v382 = vpop.f32.mrb[0].mxu0
    %383 = vdwg.mxu0
    %v384 = vsel %vm160, %v366, 0.0
    %385 = vadd.xlane.f32.xlu0 %v384
    %v386 = vpop.xlane.xlu0 %385
    %v387 = vsel %vm160, %v371, 0.0
    %388 = vadd.xlane.f32.xlu0 %v387
    %v389 = vpop.xlane.xlu0 %388
    %v390 = vsel %vm160, %v376, 0.0
    %391 = vadd.xlane.f32.xlu0 %v390
    %v392 = vpop.xlane.xlu0 %391
    %v393 = vsel %vm160, %v381, 0.0
    %394 = vadd.xlane.f32.xlu0 %v393
    %v395 = vpop.xlane.xlu0 %394
    %v396 = vmul.f32 %v386, %v173
    %v397 = vmul.f32 %v389, %v173
    %v398 = vmul.f32 %v392, %v173
    %v399 = vmul.f32 %v395, %v173
    %v400 = vsub.f32 %v366, %v396
    %v401 = vsub.f32 %v371, %v397
    %v402 = vsub.f32 %v376, %v398
    %v403 = vsub.f32 %v381, %v399
    %v404 = vmul.f32 %v400, %v400
    %v405 = vmul.f32 %v401, %v401
    %v406 = vmul.f32 %v402, %v402
    %v407 = vmul.f32 %v403, %v403
    %v408 = vsel %vm160, %v404, 0.0
    %409 = vadd.xlane.f32.xlu0 %v408
    %v410 = vpop.xlane.xlu0 %409
    %v411 = vsel %vm160, %v405, 0.0
    %412 = vadd.xlane.f32.xlu0 %v411
    %v413 = vpop.xlane.xlu0 %412
    %v414 = vsel %vm160, %v406, 0.0
    %415 = vadd.xlane.f32.xlu0 %v414
    %v416 = vpop.xlane.xlu0 %415
    %v417 = vsel %vm160, %v407, 0.0
    %418 = vadd.xlane.f32.xlu0 %v417
    %v419 = vpop.xlane.xlu0 %418
    %v420 = vmul.f32 %v410, %v173
    %v421 = vmul.f32 %v413, %v173
    %v422 = vmul.f32 %v416, %v173
    %v423 = vmul.f32 %v419, %v173
    %v424 = vadd.f32 %v420, 1e-05
    %v425 = vadd.f32 %v421, 1e-05
    %v426 = vadd.f32 %v422, 1e-05
    %v427 = vadd.f32 %v423, 1e-05
    %v428 = vrsqrt.pop %v424
    %v429 = vrsqrt.pop %v425
    %v430 = vrsqrt.pop %v426
    %v431 = vrsqrt.pop %v427
    %v432 = vmul.f32 %v400, %v428
    %v433 = vmul.f32 %v401, %v429
    %v434 = vmul.f32 %v402, %v430
    %v435 = vmul.f32 %v403, %v431
    %436 = vset.pattern.permute.xlu0 1
    %437 = vperm.xlu0 %436, %v262
    %v438 = vpop.permute.xlu0 %437
    %440 = vset.pattern.permute.xlu0 1
    %441 = vperm.xlu0 %440, %v263
    %v442 = vpop.permute.xlu0 %441
    %444 = vset.pattern.permute.xlu0 1
    %445 = vperm.xlu0 %444, %v264
    %v446 = vpop.permute.xlu0 %445
    %448 = vset.pattern.permute.xlu0 1
    %449 = vperm.xlu0 %448, %v265
    %v450 = vpop.permute.xlu0 %449
    %v452 = vmul.f32 %v432, %v438
    %v453 = vmul.f32 %v433, %v442
    %v454 = vmul.f32 %v434, %v446
    %v455 = vmul.f32 %v435, %v450
    %456 = vset.pattern.permute.xlu0 2
    %457 = vperm.xlu0 %456, %v262
    %v458 = vpop.permute.xlu0 %457
    %460 = vset.pattern.permute.xlu0 2
    %461 = vperm.xlu0 %460, %v263
    %v462 = vpop.permute.xlu0 %461
    %464 = vset.pattern.permute.xlu0 2
    %465 = vperm.xlu0 %464, %v264
    %v466 = vpop.permute.xlu0 %465
    %468 = vset.pattern.permute.xlu0 2
    %469 = vperm.xlu0 %468, %v265
    %v470 = vpop.permute.xlu0 %469
    %v472 = vadd.f32 %v452, %v458
    %v473 = vadd.f32 %v453, %v462
    %v474 = vadd.f32 %v454, %v466
    %v475 = vadd.f32 %v455, %v470
    %v476 = vmax.f32 %v472, 0.0
    %v477 = vmax.f32 %v473, 0.0
    %v478 = vmax.f32 %v474, 0.0
    %v479 = vmax.f32 %v475, 0.0
    %v480 = vld [vmem:[%s6] sm:$0xff]
    %v481 = vld [vmem:[%s6 + $0x8] sm:$0xff]
    %v482 = vld [vmem:[%s6 + $0x10] sm:$0xff]
    %v483 = vld [vmem:[%s6 + $0x18] sm:$0xff]
    %485 = vset.pattern.permute.xlu0 0
    %486 = vperm.xlu0 %485, %v480
    %v487 = vpop.permute.xlu0 %486
    %490 = vset.pattern.permute.xlu0 0
    %491 = vperm.xlu0 %490, %v481
    %v492 = vpop.permute.xlu0 %491
    %495 = vset.pattern.permute.xlu0 0
    %496 = vperm.xlu0 %495, %v482
    %v497 = vpop.permute.xlu0 %496
    %500 = vset.pattern.permute.xlu0 0
    %501 = vperm.xlu0 %500, %v483
    %v502 = vpop.permute.xlu0 %501
    %v504 = vmul.f32 %v476, %v487
    %v505 = vmul.f32 %v477, %v492
    %v506 = vmul.f32 %v478, %v497
    %v507 = vmul.f32 %v479, %v502
    %v508 = vsel %vm160, %v504, 0.0
    %v509 = vsel %vm160, %v505, 0.0
    %v510 = vadd.f32 %v508, %v509
    %v511 = vsel %vm160, %v506, 0.0
    %v512 = vadd.f32 %v510, %v511
    %v513 = vsel %vm160, %v507, 0.0
    %v514 = vadd.f32 %v512, %v513
    %v515 = vrot.slane %v514, 4
    %v516 = vadd.f32 %v514, %v515
    %v517 = vrot.slane %v516, 2
    %v518 = vadd.f32 %v516, %v517
    %v519 = vrot.slane %v518, 1
    %v520 = vadd.f32 %v518, %v519
    %s521 = sld [smem:[#allocation2]]
    %v522 = vstv %s521
    %v523 = vadd.f32 %v520, %v522
    %vm524 = vcmask 57344
    %525 = vst.msk [vmem:[#allocation3] sm:$0x1] %vm524, %v523
    // Predicated region
    $region34: #{tpu_custom_call.1} parent=1 // pred_check
      _
    $region35: #{tpu_custom_call.1} parent=1 // pred_check_branch
      %527 = sbr.rel (0) target = $region37
    $region36: #{tpu_custom_call.1} parent=1 // pred_region
      %s529 = ssub.s32 16, 16
      %530 = vsyncadd [#allocation4], %s529
      %s532 = sshll.u32 [#allocation3], 4
      %s533 = int_to_ptr.vmem [resolvable:$true] %s532
      %535 = dma.vmem_to_hbm [thread:$0]  %s533, 16, %s8, [#allocation4]
    $region37: #{tpu_custom_call.1} parent=1 // pred_fallthru
      _
    // Predicated region
    $region38: #{tpu_custom_call.1} parent=1 // pred_check
      _
    $region39: #{tpu_custom_call.1} parent=1 // pred_check_branch
      %537 = sbr.rel (0) target = $region41
    $region40: #{tpu_custom_call.1} parent=1 // pred_region
      %538 = dma.done [#allocation4], 16
    $region41: #{tpu_custom_call.1} parent=1 // pred_fallthru
      _
    %539 = vsyncpa [#allocation4], 1

</llo_original>
